<compile_context>
chip_gen: v7x
topology: tpu7x:2x2x1
jax: 0.10.0
libtpu: 0.0.40
codegen_flags: <defaults>
</compile_context>

<pallas_src>
import jax
import jax.numpy as jnp
from jax.experimental import pallas as pl
from jax.experimental.pallas import tpu as pltpu

C_ENC = 8        # encoding channels (GroupNorm(8, 8) => 8 channels, 1 ch/group)
GN_EPS = 1e-5    # torch.nn.GroupNorm default eps


# ---------------------------------------------------------------------------
# In-kernel helpers
# ---------------------------------------------------------------------------
def _small_matmul(w, x):
    """[M, K] @ [K, S] for tiny K as unrolled VPU broadcast multiply-adds.

    Avoids driving the MXU (and its serial result FIFO on v5e/v6e) for K<=8;
    falls back to jnp.dot for larger channel counts.
    """
    k = x.shape[0]
    if k <= 8:
        acc = w[:, 0:1] * x[0:1, :].astype(jnp.float32)
        for c in range(1, k):
            acc = acc + w[:, c:c + 1] * x[c:c + 1, :].astype(jnp.float32)
        return acc
    return jnp.dot(w, x.astype(jnp.float32), preferred_element_type=jnp.float32)


# ---------------------------------------------------------------------------
# Kernels
# ---------------------------------------------------------------------------
def _single_pass_kernel(x_ref, wc_ref, bc_ref, wtr_ref, btr_ref, o_ref):
    """Whole-image path: one grid step = TB batch elements.

    x_ref  : VMEM [TB, C_in, S]
    wc_ref : VMEM [8, C_in]   alpha-combined encoder + side-network weights
    bc_ref : VMEM [8, 1]
    wtr_ref: VMEM [8, 8]      transfer-network 1x1 conv
    btr_ref: VMEM [8, 1]
    o_ref  : VMEM [TB, 8, S]
    """
    tb = x_ref.shape[0]
    wc = wc_ref[...]
    bc = bc_ref[...]
    wtr = wtr_ref[...]
    btr = btr_ref[...]
    for i in range(tb):                                        # static unroll, TB <= 8
        x = x_ref[i]                                           # [C_in, S]
        m = _small_matmul(wc, x) + bc                          # merged encoding [8, S]

        # GroupNorm(8, 8, affine=False): 1 channel/group, stats over spatial.
        # Two-pass mean/var (m is resident in VMEM) for accuracy.
        inv_n = 1.0 / m.shape[-1]
        mean = jnp.sum(m, axis=-1, keepdims=True) * inv_n
        d = m - mean
        var = jnp.sum(d * d, axis=-1, keepdims=True) * inv_n
        rstd = jax.lax.rsqrt(var + GN_EPS)

        # Fold GroupNorm + transfer conv into one effective [8, C_in] conv:
        #   out = (wtr @ diag(rstd) @ wc) @ x + (wtr @ diag(rstd) @ (bc-mean) + btr)
        w_eff = wtr * rstd.reshape(1, C_ENC)                   # wtr @ diag(rstd)
        w2 = jnp.dot(w_eff, wc, preferred_element_type=jnp.float32)       # [8, C_in]
        b2 = jnp.dot(w_eff, bc - mean,
                     preferred_element_type=jnp.float32) + btr            # [8, 1]
        o = _small_matmul(w2, x) + b2
        o_ref[i] = jnp.maximum(o, 0.0).astype(o_ref.dtype)


def _stats_kernel(x_ref, wc_ref, bc_ref, sum_ref, ssq_ref):
    """Tiled pass A: accumulate per-(batch, channel) sum / sum-of-squares of the
    merged encoding across spatial tiles (spatial grid axis is 'arbitrary')."""
    s = pl.program_id(1)

    @pl.when(s == 0)
    def _():
        sum_ref[...] = jnp.zeros_like(sum_ref)
        ssq_ref[...] = jnp.zeros_like(ssq_ref)

    m = _small_matmul(wc_ref[...], x_ref[0]) + bc_ref[...]     # [8, TS]
    # TODO(synk): one-pass sum/sumsq can lose precision when |mean| >> std;
    # a shifted / Welford merge would need extra cross-tile carried state.
    sum_ref[0] = sum_ref[0] + jnp.sum(m, axis=-1, keepdims=True)
    ssq_ref[0] = ssq_ref[0] + jnp.sum(m * m, axis=-1, keepdims=True)


def _apply_kernel(x_ref, weff_ref, beff_ref, o_ref):
    """Tiled pass B: out = relu(W_eff[b] @ x_tile + b_eff[b]).

    GroupNorm + transfer conv are pre-folded into (W_eff, b_eff) in the glue,
    so each tile does a single tiny channel conv + ReLU.
    """
    o = _small_matmul(weff_ref[0], x_ref[0]) + beff_ref[0]
    o_ref[0] = jnp.maximum(o, 0.0).astype(o_ref.dtype)


# ---------------------------------------------------------------------------
# JAX glue
# ---------------------------------------------------------------------------
def _combined_weights(params, task_idx):
    """softmax(alpha)-weighted combination of encoder + side-network convs.

    Exact in real arithmetic because everything before GroupNorm is linear in x.
    Ordering matches the PyTorch forward: [base, side_0 .. side_{task_idx}].
    """
    n_side = task_idx + 1
    alphas = jnp.stack([params["alpha_base"]]
                       + [params["alpha_side"][t] for t in range(n_side)])
    a = jax.nn.softmax(alphas)                                 # [n_side + 1]
    w_all = jnp.stack([params["w_enc"]]
                      + [params["w_side"][t] for t in range(n_side)])
    b_all = jnp.stack([params["b_enc"]]
                      + [params["b_side"][t] for t in range(n_side)])
    wc = jnp.einsum("t,toc->oc", a, w_all)                     # [8, C_in]
    bc = jnp.einsum("t,to->o", a, b_all).reshape(C_ENC, 1)     # [8, 1]
    return wc.astype(jnp.float32), bc.astype(jnp.float32)


def _vmem_budget_bytes():
    """Per-generation scoped-VMEM budget for this kernel family."""
    kind = ""
    try:
        kind = jax.devices()[0].device_kind.lower()
    except Exception:
        pass
    if "v5 lite" in kind or "v5e" in kind or "v5litepod" in kind:
        return 48 << 20          # raise past v5e's 16 MiB scoped default (128 MiB phys)
    if "v7" in kind:
        return 40 << 20          # v7x: 64 MiB physical per TC -> leave headroom
    return 64 << 20              # v6e / v4 / others: 128 MiB physical


def _lane_cap(c_in, bytes_x, bytes_out, budget):
    """Max spatial lanes per grid step so double-buffered in+out fit ~half budget."""
    sub_in = ((c_in + 7) // 8) * 8
    per_lane = 2 * (sub_in * bytes_x + C_ENC * max(bytes_out, 4))
    cap = (budget // 2) // per_lane
    return max(128, (cap // 128) * 128)


def _round_up(n, m):
    return ((n + m - 1) // m) * m


def _largest_dividing_tile(S, max_lanes):
    best = None
    ts = 128
    lim = min(S, max_lanes)
    while ts <= lim:
        if S % ts == 0:
            best = ts
        ts += 128
    return best


def _choose_spatial_tile(S, max_lanes):
    """Return (ts, S_pad): ts a multiple of 128 that divides S_pad >= S."""
    if S % 128 == 0:
        ts = _largest_dividing_tile(S, max_lanes)
        if ts is not None:
            return ts, S
    ts = min(max(128, (max_lanes // 128) * 128), _round_up(S, 128))
    return ts, _round_up(S, ts)


def _pick_batch_block(B, S, lane_budget):
    """Largest batch block (<=8) dividing B, fitting the lane budget, and keeping
    at least 2 grid steps when B >= 2 (so both v7x TensorCores stay fed)."""
    max_tb = max(1, min(8, lane_budget // max(S, 1)))
    best = 1
    for tb in range(1, max_tb + 1):
        if B % tb != 0:
            continue
        if B >= 2 and B // tb < 2:
            continue
        best = tb
    return best


def boosted_forward(x_nchw, params, task_idx, *,
                    single_pass_max_lanes=256 * 1024,
                    tile_max_lanes=128 * 1024,
                    out_dtype=None):
    """Pallas implementation of BoostedNetwork.forward(x, task_idx)."""
    B, C_in, H, W = x_nchw.shape
    S = H * W
    out_dtype = x_nchw.dtype if out_dtype is None else out_dtype
    x = x_nchw.reshape(B, C_in, S)        # no pre-kernel astype copy; upcast in VMEM

    wc, bc = _combined_weights(params, task_idx)
    wtr = params["w_tr"].astype(jnp.float32)
    btr = params["b_tr"].reshape(C_ENC, 1).astype(jnp.float32)

    budget = _vmem_budget_bytes()
    cap = _lane_cap(C_in, jnp.dtype(x.dtype).itemsize,
                    jnp.dtype(out_dtype).itemsize, budget)
    ts_cap = min(tile_max_lanes, cap)
    single_cap = min(single_pass_max_lanes, cap)
    cparams = dict(vmem_limit_bytes=budget)

    use_single_pass = S <= single_cap
    if B == 1 and S > ts_cap:
        # A batch-only grid would leave one v7x TensorCore idle; go tiled.
        use_single_pass = False

    if use_single_pass:
        tb = _pick_batch_block(B, S, single_cap)
        out = pl.pallas_call(
            _single_pass_kernel,
            out_shape=jax.ShapeDtypeStruct((B, C_ENC, S), out_dtype),
            grid=(B // tb,),
            in_specs=[
                pl.BlockSpec((tb, C_in, S), lambda b: (b, 0, 0)),      # x
                pl.BlockSpec((C_ENC, C_in), lambda b: (0, 0)),         # w_comb
                pl.BlockSpec((C_ENC, 1), lambda b: (0, 0)),            # b_comb
                pl.BlockSpec((C_ENC, C_ENC), lambda b: (0, 0)),        # w_tr
                pl.BlockSpec((C_ENC, 1), lambda b: (0, 0)),            # b_tr
            ],
            out_specs=pl.BlockSpec((tb, C_ENC, S), lambda b: (b, 0, 0)),
            compiler_params=pltpu.CompilerParams(
                dimension_semantics=("parallel",), **cparams),
        )(x, wc, bc, wtr, btr)
        return out.reshape(B, C_ENC, H, W)

    # ---- spatially tiled two-sweep path (large images) ----------------------
    ts, S_pad = _choose_spatial_tile(S, ts_cap)
    if S_pad != S:
        x = jnp.pad(x, ((0, 0), (0, 0), (0, S_pad - S)))
    n_s = S_pad // ts

    sums, ssqs = pl.pallas_call(
        _stats_kernel,
        out_shape=(jax.ShapeDtypeStruct((B, C_ENC, 1), jnp.float32),
                   jax.ShapeDtypeStruct((B, C_ENC, 1), jnp.float32)),
        grid=(B, n_s),
        in_specs=[
            pl.BlockSpec((1, C_in, ts), lambda b, s: (b, 0, s)),       # x
            pl.BlockSpec((C_ENC, C_in), lambda b, s: (0, 0)),          # w_comb
            pl.BlockSpec((C_ENC, 1), lambda b, s: (0, 0)),             # b_comb
        ],
        out_specs=(pl.BlockSpec((1, C_ENC, 1), lambda b, s: (b, 0, 0)),
                   pl.BlockSpec((1, C_ENC, 1), lambda b, s: (b, 0, 0))),
        compiler_params=pltpu.CompilerParams(
            dimension_semantics=("parallel", "arbitrary"), **cparams),
    )(x, wc, bc)

    # Padded lanes have x == 0, so their merged encoding is exactly bc.
    # Subtract their exact contribution before forming the statistics.
    n_pad = float(S_pad - S)
    bc_row = bc.reshape(1, C_ENC, 1)
    sums = sums - n_pad * bc_row
    ssqs = ssqs - n_pad * bc_row * bc_row
    mean = sums / S                                            # [B, 8, 1]
    var = jnp.maximum(ssqs / S - mean * mean, 0.0)
    rstd = jax.lax.rsqrt(var + GN_EPS)

    # Fold GroupNorm + transfer conv into per-image effective weights so pass B
    # is a single tiny conv: out = relu(W_eff[b] @ x + b_eff[b]).
    w_scaled = wtr[None, :, :] * rstd.reshape(B, 1, C_ENC)     # wtr @ diag(rstd)
    w_eff = jnp.einsum("bij,jc->bic", w_scaled, wc).astype(jnp.float32)   # [B,8,C_in]
    b_eff = (jnp.einsum("bij,bjk->bik", w_scaled,
                        bc.reshape(1, C_ENC, 1) - mean)
             + btr.reshape(1, C_ENC, 1)).astype(jnp.float32)              # [B,8,1]

    out = pl.pallas_call(
        _apply_kernel,
        out_shape=jax.ShapeDtypeStruct((B, C_ENC, S_pad), out_dtype),
        grid=(B, n_s),
        in_specs=[
            pl.BlockSpec((1, C_in, ts), lambda b, s: (b, 0, s)),       # x
            pl.BlockSpec((1, C_ENC, C_in), lambda b, s: (b, 0, 0)),    # W_eff[b]
            pl.BlockSpec((1, C_ENC, 1), lambda b, s: (b, 0, 0)),       # b_eff[b]
        ],
        out_specs=pl.BlockSpec((1, C_ENC, ts), lambda b, s: (b, 0, s)),
        compiler_params=pltpu.CompilerParams(
            dimension_semantics=("parallel", "parallel"), **cparams),
    )(x, w_eff, b_eff)
    if S_pad != S:
        out = out[:, :, :S]
    return out.reshape(B, C_ENC, H, W)


# ---------------------------------------------------------------------------
# Synthetic parameters + pure-JAX reference (for validation)
# ---------------------------------------------------------------------------
def init_params(key, c_in, n_tasks=10):
    """Deterministic synthetic parameters (module __init__ only fixes shapes)."""
    # TODO(synk): encoder/side/transfer submodule architectures are synthetic
    # 1x1 convs; the real classes are injected via config in the PyTorch code.
    ks = jax.random.split(key, 4 + 2 * n_tasks)
    return {
        "w_enc": 0.1 * jax.random.normal(ks[0], (C_ENC, c_in), jnp.float32),
        "b_enc": 0.1 * jax.random.normal(ks[1], (C_ENC,), jnp.float32),
        "w_tr": 0.1 * jax.random.normal(ks[2], (C_ENC, C_ENC), jnp.float32),
        "b_tr": 0.1 * jax.random.normal(ks[3], (C_ENC,), jnp.float32),
        "w_side": [0.1 * jax.random.normal(ks[4 + 2 * t], (C_ENC, c_in),
                                           jnp.float32)
                   for t in range(n_tasks)],
        "b_side": [0.1 * jax.random.normal(ks[5 + 2 * t], (C_ENC,),
                                           jnp.float32)
                   for t in range(n_tasks)],
        # nn.Parameter(torch.tensor(0.0)) for every alpha
        "alpha_base": jnp.array(0.0, jnp.float32),
        "alpha_side": [jnp.array(0.0, jnp.float32) for _ in range(n_tasks)],
    }


def ref_forward(x_nchw, params, task_idx):
    """Pure-JAX reference mirroring the PyTorch forward."""
    def conv1x1(x, w, b):
        return jnp.einsum("oc,bchw->bohw", w, x) + b[None, :, None, None]

    n_side = task_idx + 1
    base = conv1x1(x_nchw, params["w_enc"], params["b_enc"])
    sides = [conv1x1(x_nchw, params["w_side"][t], params["b_side"][t])
             for t in range(n_side)]
    alphas = jnp.stack([params["alpha_base"]]
                       + [params["alpha_side"][t] for t in range(n_side)])
    a = jax.nn.softmax(alphas)
    merged = a[0] * base
    for t in range(n_side):
        merged = merged + a[t + 1] * sides[t]
    mean = jnp.mean(merged, axis=(2, 3), keepdims=True)
    var = jnp.mean((merged - mean) ** 2, axis=(2, 3), keepdims=True)
    gn = (merged - mean) * jax.lax.rsqrt(var + GN_EPS)
    out = conv1x1(gn, params["w_tr"], params["b_tr"])
    return jnp.maximum(out, 0.0)


if __name__ == "__main__":
    key = jax.random.PRNGKey(0)
    kx, kp, kx2, kx3 = jax.random.split(key, 4)

    B, C_in, H, W = 2, 3, 16, 16      # rgb_filled input, small shapes
    task_idx = 2                      # uses base + side nets 0, 1, 2
    params = init_params(kp, C_in)

    # 1) small image -> single-pass whole-image kernel (batch-blocked grid)
    x = jax.random.normal(kx, (B, C_in, H, W), jnp.float32)
    out = jax.block_until_ready(boosted_forward(x, params, task_idx))
    ref = ref_forward(x, params, task_idx)
    assert out.shape == (B, C_ENC, H, W)
    assert jnp.allclose(out, ref, atol=2e-3, rtol=2e-3), "single-pass mismatch"

    # 2) larger image, force the spatially tiled two-sweep path (stats + apply)
    H2 = W2 = 32
    x2 = jax.random.normal(kx2, (B, C_in, H2, W2), jnp.float32)
    out2 = jax.block_until_ready(
        boosted_forward(x2, params, task_idx,
                        single_pass_max_lanes=256, tile_max_lanes=256))
    ref2 = ref_forward(x2, params, task_idx)
    assert out2.shape == (B, C_ENC, H2, W2)
    assert jnp.allclose(out2, ref2, atol=2e-3, rtol=2e-3), "tiled path mismatch"

    # 3) spatial size not divisible by 128 -> padded tiled path + exact
    #    GroupNorm statistics correction for the padded lanes
    H3 = W3 = 20                       # S = 400, not a multiple of 128
    x3 = jax.random.normal(kx3, (1, C_in, H3, W3), jnp.float32)
    out3 = jax.block_until_ready(
        boosted_forward(x3, params, task_idx,
                        single_pass_max_lanes=128, tile_max_lanes=256))
    ref3 = ref_forward(x3, params, task_idx)
    assert out3.shape == (1, C_ENC, H3, W3)
    assert jnp.allclose(out3, ref3, atol=2e-3, rtol=2e-3), "padded path mismatch"

    print("KERNEL_OK")
</pallas_src>

<mosaic_0001>
module attributes {stable_mosaic.version = 11 : i64} {
  func.func @_single_pass_kernel(%arg0: i32, %arg1: memref<1x3x256xf32, #tpu.memory_space<vmem>>, %arg2: memref<8x3xf32, #tpu.memory_space<vmem>>, %arg3: memref<8x1xf32, #tpu.memory_space<vmem>>, %arg4: memref<8x8xf32, #tpu.memory_space<vmem>>, %arg5: memref<8x1xf32, #tpu.memory_space<vmem>>, %arg6: memref<1x8x256xf32, #tpu.memory_space<vmem>>) attributes {dimension_semantics = [#tpu.dimension_semantics<parallel>], iteration_bounds = array<i64: 2>, scalar_prefetch = 0 : i64, scratch_operands = 0 : i64, tpu.core_type = #tpu.core_type<tc>, window_params = [{transform_indices = @transform_0, window_bounds = array<i64: 1, 3, 256>}, {pipeline_mode = #tpu.pipeline_mode<synchronous>, transform_indices = @transform_1, window_bounds = array<i64: 8, 3>}, {pipeline_mode = #tpu.pipeline_mode<synchronous>, transform_indices = @transform_2, window_bounds = array<i64: 8, 1>}, {pipeline_mode = #tpu.pipeline_mode<synchronous>, transform_indices = @transform_3, window_bounds = array<i64: 8, 8>}, {pipeline_mode = #tpu.pipeline_mode<synchronous>, transform_indices = @transform_4, window_bounds = array<i64: 8, 1>}, {transform_indices = @transform_5, window_bounds = array<i64: 1, 8, 256>}]} {
    %c0 = arith.constant 0 : index
    %c0_0 = arith.constant 0 : index
    %0 = vector.load %arg2[%c0, %c0_0] : memref<8x3xf32, #tpu.memory_space<vmem>>, vector<8x3xf32>
    %c0_1 = arith.constant 0 : index
    %c0_2 = arith.constant 0 : index
    %1 = vector.load %arg3[%c0_1, %c0_2] : memref<8x1xf32, #tpu.memory_space<vmem>>, vector<8x1xf32>
    %c0_3 = arith.constant 0 : index
    %c0_4 = arith.constant 0 : index
    %2 = vector.load %arg4[%c0_3, %c0_4] : memref<8x8xf32, #tpu.memory_space<vmem>>, vector<8x8xf32>
    %c0_5 = arith.constant 0 : index
    %c0_6 = arith.constant 0 : index
    %3 = vector.load %arg5[%c0_5, %c0_6] : memref<8x1xf32, #tpu.memory_space<vmem>>, vector<8x1xf32>
    %c0_7 = arith.constant 0 : index
    %c0_8 = arith.constant 0 : index
    %c0_9 = arith.constant 0 : index
    %4 = vector.load %arg1[%c0_7, %c0_8, %c0_9] : memref<1x3x256xf32, #tpu.memory_space<vmem>>, vector<1x3x256xf32>
    %5 = vector.shape_cast %4 : vector<1x3x256xf32> to vector<3x256xf32>
    %6 = vector.extract_strided_slice %0 {offsets = [0, 0], sizes = [8, 1], strides = [1, 1]} : vector<8x3xf32> to vector<8x1xf32>
    %7 = vector.extract_strided_slice %5 {offsets = [0, 0], sizes = [1, 256], strides = [1, 1]} : vector<3x256xf32> to vector<1x256xf32>
    %8 = vector.broadcast %6 : vector<8x1xf32> to vector<8x256xf32>
    %9 = vector.broadcast %7 : vector<1x256xf32> to vector<8x256xf32>
    %10 = arith.mulf %8, %9 : vector<8x256xf32>
    %11 = vector.extract_strided_slice %0 {offsets = [0, 1], sizes = [8, 1], strides = [1, 1]} : vector<8x3xf32> to vector<8x1xf32>
    %12 = vector.extract_strided_slice %5 {offsets = [1, 0], sizes = [1, 256], strides = [1, 1]} : vector<3x256xf32> to vector<1x256xf32>
    %13 = vector.broadcast %11 : vector<8x1xf32> to vector<8x256xf32>
    %14 = vector.broadcast %12 : vector<1x256xf32> to vector<8x256xf32>
    %15 = arith.mulf %13, %14 : vector<8x256xf32>
    %16 = arith.addf %10, %15 : vector<8x256xf32>
    %17 = vector.extract_strided_slice %0 {offsets = [0, 2], sizes = [8, 1], strides = [1, 1]} : vector<8x3xf32> to vector<8x1xf32>
    %18 = vector.extract_strided_slice %5 {offsets = [2, 0], sizes = [1, 256], strides = [1, 1]} : vector<3x256xf32> to vector<1x256xf32>
    %19 = vector.broadcast %17 : vector<8x1xf32> to vector<8x256xf32>
    %20 = vector.broadcast %18 : vector<1x256xf32> to vector<8x256xf32>
    %21 = arith.mulf %19, %20 : vector<8x256xf32>
    %22 = arith.addf %16, %21 : vector<8x256xf32>
    %23 = vector.broadcast %1 : vector<8x1xf32> to vector<8x256xf32>
    %24 = arith.addf %22, %23 : vector<8x256xf32>
    %cst = arith.constant dense<0.000000e+00> : vector<8xf32>
    %25 = vector.multi_reduction <add>, %24, %cst [1] : vector<8x256xf32> to vector<8xf32>
    %26 = vector.shape_cast %25 : vector<8xf32> to vector<8x1xf32>
    %cst_10 = arith.constant 3.906250e-03 : f32
    %27 = vector.broadcast %cst_10 : f32 to vector<8x1xf32>
    %28 = arith.mulf %26, %27 : vector<8x1xf32>
    %29 = vector.broadcast %28 : vector<8x1xf32> to vector<8x256xf32>
    %30 = arith.subf %24, %29 : vector<8x256xf32>
    %31 = arith.mulf %30, %30 : vector<8x256xf32>
    %cst_11 = arith.constant dense<0.000000e+00> : vector<8xf32>
    %32 = vector.multi_reduction <add>, %31, %cst_11 [1] : vector<8x256xf32> to vector<8xf32>
    %33 = vector.shape_cast %32 : vector<8xf32> to vector<8x1xf32>
    %cst_12 = arith.constant 3.906250e-03 : f32
    %34 = vector.broadcast %cst_12 : f32 to vector<8x1xf32>
    %35 = arith.mulf %33, %34 : vector<8x1xf32>
    %cst_13 = arith.constant 9.99999974E-6 : f32
    %36 = vector.broadcast %cst_13 : f32 to vector<8x1xf32>
    %37 = arith.addf %35, %36 : vector<8x1xf32>
    %38 = math.rsqrt %37 : vector<8x1xf32>
    %39 = vector.shape_cast %38 : vector<8x1xf32> to vector<1x8xf32>
    %40 = vector.broadcast %39 : vector<1x8xf32> to vector<8x8xf32>
    %41 = arith.mulf %2, %40 : vector<8x8xf32>
    %cst_14 = arith.constant dense<0.000000e+00> : vector<8x3xf32>
    %42 = tpu.matmul %41, %0, %cst_14 {dimension_numbers = #tpu.dot_dimension_numbers<[1], [0], [0], [1], [0, 0, 1, 1], [], []>} : vector<8x8xf32>, vector<8x3xf32>, vector<8x3xf32> -> vector<8x3xf32>
    %43 = arith.subf %1, %28 : vector<8x1xf32>
    %cst_15 = arith.constant dense<0.000000e+00> : vector<8x1xf32>
    %44 = tpu.matmul %41, %43, %cst_15 {dimension_numbers = #tpu.dot_dimension_numbers<[1], [0], [0], [1], [0, 0, 1, 1], [], []>} : vector<8x8xf32>, vector<8x1xf32>, vector<8x1xf32> -> vector<8x1xf32>
    %45 = arith.addf %44, %3 : vector<8x1xf32>
    %46 = vector.extract_strided_slice %42 {offsets = [0, 0], sizes = [8, 1], strides = [1, 1]} : vector<8x3xf32> to vector<8x1xf32>
    %47 = vector.extract_strided_slice %5 {offsets = [0, 0], sizes = [1, 256], strides = [1, 1]} : vector<3x256xf32> to vector<1x256xf32>
    %48 = vector.broadcast %46 : vector<8x1xf32> to vector<8x256xf32>
    %49 = vector.broadcast %47 : vector<1x256xf32> to vector<8x256xf32>
    %50 = arith.mulf %48, %49 : vector<8x256xf32>
    %51 = vector.extract_strided_slice %42 {offsets = [0, 1], sizes = [8, 1], strides = [1, 1]} : vector<8x3xf32> to vector<8x1xf32>
    %52 = vector.extract_strided_slice %5 {offsets = [1, 0], sizes = [1, 256], strides = [1, 1]} : vector<3x256xf32> to vector<1x256xf32>
    %53 = vector.broadcast %51 : vector<8x1xf32> to vector<8x256xf32>
    %54 = vector.broadcast %52 : vector<1x256xf32> to vector<8x256xf32>
    %55 = arith.mulf %53, %54 : vector<8x256xf32>
    %56 = arith.addf %50, %55 : vector<8x256xf32>
    %57 = vector.extract_strided_slice %42 {offsets = [0, 2], sizes = [8, 1], strides = [1, 1]} : vector<8x3xf32> to vector<8x1xf32>
    %58 = vector.extract_strided_slice %5 {offsets = [2, 0], sizes = [1, 256], strides = [1, 1]} : vector<3x256xf32> to vector<1x256xf32>
    %59 = vector.broadcast %57 : vector<8x1xf32> to vector<8x256xf32>
    %60 = vector.broadcast %58 : vector<1x256xf32> to vector<8x256xf32>
    %61 = arith.mulf %59, %60 : vector<8x256xf32>
    %62 = arith.addf %56, %61 : vector<8x256xf32>
    %63 = vector.broadcast %45 : vector<8x1xf32> to vector<8x256xf32>
    %64 = arith.addf %62, %63 : vector<8x256xf32>
    %cst_16 = arith.constant 0.000000e+00 : f32
    %65 = vector.broadcast %cst_16 : f32 to vector<8x256xf32>
    %66 = arith.maximumf %64, %65 : vector<8x256xf32>
    %c0_17 = arith.constant 0 : index
    %c0_18 = arith.constant 0 : index
    %c0_19 = arith.constant 0 : index
    %67 = vector.load %arg6[%c0_17, %c0_18, %c0_19] : memref<1x8x256xf32, #tpu.memory_space<vmem>>, vector<1x8x256xf32>
    %68 = vector.shape_cast %67 : vector<1x8x256xf32> to vector<8x256xf32>
    %69 = vector.shape_cast %66 : vector<8x256xf32> to vector<1x8x256xf32>
    tpu.vector_store %arg6[%c0_17, %c0_18, %c0_19], %69 {strides = array<i32>} : memref<1x8x256xf32, #tpu.memory_space<vmem>>, vector<1x8x256xf32>,
    return
  }
  func.func @transform_0(%arg0: i32) -> (i32, i32, i32) {
    %c0_i32 = arith.constant 0 : i32
    %c0_i32_0 = arith.constant 0 : i32
    %c0_i32_1 = arith.constant 0 : i32
    return %arg0, %c0_i32, %c0_i32_0 : i32, i32, i32
  }
  func.func @transform_1(%arg0: i32) -> (i32, i32) {
    %c0_i32 = arith.constant 0 : i32
    %c0_i32_0 = arith.constant 0 : i32
    %c0_i32_1 = arith.constant 0 : i32
    return %c0_i32, %c0_i32_0 : i32, i32
  }
  func.func @transform_2(%arg0: i32) -> (i32, i32) {
    %c0_i32 = arith.constant 0 : i32
    %c0_i32_0 = arith.constant 0 : i32
    %c0_i32_1 = arith.constant 0 : i32
    return %c0_i32, %c0_i32_0 : i32, i32
  }
  func.func @transform_3(%arg0: i32) -> (i32, i32) {
    %c0_i32 = arith.constant 0 : i32
    %c0_i32_0 = arith.constant 0 : i32
    %c0_i32_1 = arith.constant 0 : i32
    return %c0_i32, %c0_i32_0 : i32, i32
  }
  func.func @transform_4(%arg0: i32) -> (i32, i32) {
    %c0_i32 = arith.constant 0 : i32
    %c0_i32_0 = arith.constant 0 : i32
    %c0_i32_1 = arith.constant 0 : i32
    return %c0_i32, %c0_i32_0 : i32, i32
  }
  func.func @transform_5(%arg0: i32) -> (i32, i32, i32) {
    %c0_i32 = arith.constant 0 : i32
    %c0_i32_0 = arith.constant 0 : i32
    %c0_i32_1 = arith.constant 0 : i32
    return %arg0, %c0_i32, %c0_i32_0 : i32, i32, i32
  }
}

</mosaic_0001>

<llo_original>
// kernel: tpu_custom_call.1
$region0: #{tpu_custom_call.1}
  #allocation0 [shape = 'u32[]', space=smem, size = 0x4, offset = 0x4, fixed_abs, tag = 'smem constant byte address 0x4 - core index']
  #allocation1 [shape = 'u32[144,128]{1,0:T(1,128)}', space=vmem, size = 0x12000, scoped, tag = 'internal scratch']
  %s0 = inlined_call_operand.hbm [shape: f32[2,3,256], index: 0, kind: input, shape index: {}]
  %s1 = inlined_call_operand.hbm [shape: f32[8,3], index: 1, kind: input, shape index: {}]
  %s2 = inlined_call_operand.hbm [shape: f32[8,1], index: 2, kind: input, shape index: {}]
  %s3 = inlined_call_operand.hbm [shape: f32[8,8], index: 3, kind: input, shape index: {}]
  %s4 = inlined_call_operand.hbm [shape: f32[8,1], index: 4, kind: input, shape index: {}]
  %s5 = inlined_call_operand.hbm [shape: f32[2,8,256], index: 5, kind: output, shape index: {}]
  %s6 = sld [smem:[#allocation0]]
  $region73: #{tpu_custom_call.1} parent=0
    _
  %s8 = ssub.s32 1, %s6
  %s9 = scalar_select 0, %s8, %s6
  $region1: #{tpu_custom_call.1} parent=0
    #allocation2 [shape = 'u8[8192]{0}', space=vmem, size = 0x2000, scoped, tag = 'input window, operand 0']
    #allocation3 [shape = 's32[2]{0}', space=sflag, size = 0x8, scoped, tag = 'scoped memory for tpu_custom_call.1']
    #allocation4 [shape = 's32[2]{0}', space=sflag, size = 0x8, scoped, tag = 'scoped memory for tpu_custom_call.1']
    #allocation5 [shape = 'u8[4096]{0}', space=vmem, size = 0x1000, scoped, tag = 'input window, operand 1, single buffered']
    #allocation6 [shape = 's32[1]{0}', space=sflag, size = 0x4, scoped, tag = 'scoped memory for tpu_custom_call.1']
    #allocation7 [shape = 'u8[4096]{0}', space=vmem, size = 0x1000, scoped, tag = 'input window, operand 2, single buffered']
    #allocation8 [shape = 'u8[4096]{0}', space=vmem, size = 0x1000, scoped, tag = 'input window, operand 3, single buffered']
    #allocation9 [shape = 's32[1]{0}', space=sflag, size = 0x4, scoped, tag = 'scoped memory for tpu_custom_call.1']
    #allocation10 [shape = 'u8[4096]{0}', space=vmem, size = 0x1000, scoped, tag = 'input window, operand 4, single buffered']
    #allocation11 [shape = 'u8[16384]{0}', space=vmem, size = 0x4000, scoped, tag = 'output window, operand 0']
    %10 = vsyncpa [#allocation3], 0
    %s11 = scalar_lea.sflag [#allocation3], 1
    %12 = vsyncpa %s11, 0
    %13 = vsyncpa [#allocation6], 0
    %14 = vsyncpa [#allocation9], 0
    %15 = vsyncpa [#allocation4], 0
    %s16 = scalar_lea.sflag [#allocation4], 1
    %17 = vsyncpa %s16, 0
    loop: start=0, step=1, limit=4
    $region2: #{tpu_custom_call.1} parent=1 // loop_pre_header
      _
    $region3: #{tpu_custom_call.1} parent=1 // loop_header
      %s19 = sphi 0, %s23
      %p20 = scmp.ge.s32.totalorder %s19, 4
      %s29 = sphi 0, %s31
      %s32 = sphi 0, %s29
      %s33 = sphi 0, %s32
      %s49 = sphi 0, %s33
      %s53 = sphi 0, %s53
      %s55 = sphi 0, %s53
      %s56 = sphi 0, %s55
      %s70 = sphi 0, %s56
      %s74 = sphi 0, %s74
      %s76 = sphi 0, %s74
      %s77 = sphi 0, %s76
      %s91 = sphi 0, %s77
      %s95 = sphi 0, %s95
      %s97 = sphi 0, %s95
      %s98 = sphi 0, %s97
      %s112 = sphi 0, %s98
      %s116 = sphi 0, %s116
      %s118 = sphi 0, %s116
      %s119 = sphi 0, %s118
      %s133 = sphi 0, %s119
      %s139 = sphi 0, %s141
      %s142 = sphi 0, %s139
      %s143 = sphi 0, %s142
      %s159 = sphi 0, %s143
    $region4: #{tpu_custom_call.1} parent=1 // loop_header_branch
      %22 = sbr.rel (%p20) target = $region8
    $region5: #{tpu_custom_call.1} parent=1 // loop_body
      %s24 = ssub.s32 %s19, 1
      %s25 = ssub.s32 %s19, 2
      %s26 = sadd.s32 %s19, 1
      %s27 = ssub.s32 %s19, %s26
      %p28 = scmp.eq.s32.totalorder %s27, 0
      %s30 = sadd.s32 %s29, 1
      %s31 = scalar_select %p28, %s29, %s30
      %p34 = pneg %p28
      %p35 = scmp.eq.s32.totalorder %s19, 1
      %p36 = por %p34, %p35
      %p37 = scmp.ne.s32.totalorder %s29, %s32
      %p38 = scmp.eq.s32.totalorder %s19, 0
      %p39 = por %p37, %p38
      %p40 = scmp.ne.s32.totalorder %s29, %s32
      %p41 = scmp.eq.s32.totalorder %s24, 1
      %p42 = por %p40, %p41
      %p43 = scmp.ne.s32.totalorder %s32, %s33
      %p44 = scmp.eq.s32.totalorder %s24, 0
      %p45 = por %p43, %p44
      %p46 = scmp.ne.s32.totalorder %s32, %s33
      %p47 = scmp.eq.s32.totalorder %s25, 1
      %p48 = por %p46, %p47
      %p50 = scmp.ne.s32.totalorder %s33, %s49
      %p51 = scmp.eq.s32.totalorder %s25, 0
      %p52 = por %p50, %p51
      %s54 = sadd.s32 %s53, 1
      %p57 = scmp.eq.s32.totalorder %s19, 1
      %p58 = scmp.ne.s32.totalorder %s53, %s55
      %p59 = scmp.eq.s32.totalorder %s19, 0
      %p60 = por %p58, %p59
      %p61 = scmp.ne.s32.totalorder %s53, %s55
      %p62 = scmp.eq.s32.totalorder %s24, 1
      %p63 = por %p61, %p62
      %p64 = scmp.ne.s32.totalorder %s55, %s56
      %p65 = scmp.eq.s32.totalorder %s24, 0
      %p66 = por %p64, %p65
      %p67 = scmp.ne.s32.totalorder %s55, %s56
      %p68 = scmp.eq.s32.totalorder %s25, 1
      %p69 = por %p67, %p68
      %p71 = scmp.ne.s32.totalorder %s56, %s70
      %p72 = scmp.eq.s32.totalorder %s25, 0
      %p73 = por %p71, %p72
      %s75 = sadd.s32 %s74, 1
      %p78 = scmp.eq.s32.totalorder %s19, 1
      %p79 = scmp.ne.s32.totalorder %s74, %s76
      %p80 = scmp.eq.s32.totalorder %s19, 0
      %p81 = por %p79, %p80
      %p82 = scmp.ne.s32.totalorder %s74, %s76
      %p83 = scmp.eq.s32.totalorder %s24, 1
      %p84 = por %p82, %p83
      %p85 = scmp.ne.s32.totalorder %s76, %s77
      %p86 = scmp.eq.s32.totalorder %s24, 0
      %p87 = por %p85, %p86
      %p88 = scmp.ne.s32.totalorder %s76, %s77
      %p89 = scmp.eq.s32.totalorder %s25, 1
      %p90 = por %p88, %p89
      %p92 = scmp.ne.s32.totalorder %s77, %s91
      %p93 = scmp.eq.s32.totalorder %s25, 0
      %p94 = por %p92, %p93
      %s96 = sadd.s32 %s95, 1
      %p99 = scmp.eq.s32.totalorder %s19, 1
      %p100 = scmp.ne.s32.totalorder %s95, %s97
      %p101 = scmp.eq.s32.totalorder %s19, 0
      %p102 = por %p100, %p101
      %p103 = scmp.ne.s32.totalorder %s95, %s97
      %p104 = scmp.eq.s32.totalorder %s24, 1
      %p105 = por %p103, %p104
      %p106 = scmp.ne.s32.totalorder %s97, %s98
      %p107 = scmp.eq.s32.totalorder %s24, 0
      %p108 = por %p106, %p107
      %p109 = scmp.ne.s32.totalorder %s97, %s98
      %p110 = scmp.eq.s32.totalorder %s25, 1
      %p111 = por %p109, %p110
      %p113 = scmp.ne.s32.totalorder %s98, %s112
      %p114 = scmp.eq.s32.totalorder %s25, 0
      %p115 = por %p113, %p114
      %s117 = sadd.s32 %s116, 1
      %p120 = scmp.eq.s32.totalorder %s19, 1
      %p121 = scmp.ne.s32.totalorder %s116, %s118
      %p122 = scmp.eq.s32.totalorder %s19, 0
      %p123 = por %p121, %p122
      %p124 = scmp.ne.s32.totalorder %s116, %s118
      %p125 = scmp.eq.s32.totalorder %s24, 1
      %p126 = por %p124, %p125
      %p127 = scmp.ne.s32.totalorder %s118, %s119
      %p128 = scmp.eq.s32.totalorder %s24, 0
      %p129 = por %p127, %p128
      %p130 = scmp.ne.s32.totalorder %s118, %s119
      %p131 = scmp.eq.s32.totalorder %s25, 1
      %p132 = por %p130, %p131
      %p134 = scmp.ne.s32.totalorder %s119, %s133
      %p135 = scmp.eq.s32.totalorder %s25, 0
      %p136 = por %p134, %p135
      %s137 = ssub.s32 %s19, %s26
      %p138 = scmp.eq.s32.totalorder %s137, 0
      %s140 = sadd.s32 %s139, 1
      %s141 = scalar_select %p138, %s139, %s140
      %p144 = pneg %p138
      %p145 = scmp.eq.s32.totalorder %s19, 1
      %p146 = por %p144, %p145
      %p147 = scmp.ne.s32.totalorder %s139, %s142
      %p148 = scmp.eq.s32.totalorder %s19, 0
      %p149 = por %p147, %p148
      %p150 = scmp.ne.s32.totalorder %s139, %s142
      %p151 = scmp.eq.s32.totalorder %s24, 1
      %p152 = por %p150, %p151
      %p153 = scmp.ne.s32.totalorder %s142, %s143
      %p154 = scmp.eq.s32.totalorder %s24, 0
      %p155 = por %p153, %p154
      %p156 = scmp.ne.s32.totalorder %s142, %s143
      %p157 = scmp.eq.s32.totalorder %s25, 1
      %p158 = por %p156, %p157
      %p160 = scmp.ne.s32.totalorder %s143, %s159
      %p161 = scmp.eq.s32.totalorder %s25, 0
      %p162 = por %p160, %p161
      %p163 = scmp.le.s32.totalorder 1, %s19
      %p164 = scmp.lt.s32.totalorder %s19, 3
      %p165 = pnand %p163, %p164
      %p166 = pneg %p165
      // Predicated region
      $region9: #{tpu_custom_call.1} parent=5 // pred_check
        _
      $region10: #{tpu_custom_call.1} parent=5 // pred_check_branch
        %168 = sbr.rel (%p165) target = $region12
      $region11: #{tpu_custom_call.1} parent=5 // pred_region
        %s169 = ssub.s32 %s19, 1
        // Predicated region
        $region13: #{tpu_custom_call.1} parent=11 // pred_check
          %p170 = pneg %p66
        $region14: #{tpu_custom_call.1} parent=11 // pred_check_branch
          %172 = sbr.rel (%p170) target = $region16
        $region15: #{tpu_custom_call.1} parent=11 // pred_region
          %s174 = ssub.s32 128, 128
          %175 = vsyncadd [#allocation6], %s174
          %s177 = sshll.u32 [#allocation5], 4
          %s178 = int_to_ptr.vmem [resolvable:$true] %s177
          %180 = dma.hbm_to_vmem [thread:$0]  %s1, 128, %s178, [#allocation6]
        $region16: #{tpu_custom_call.1} parent=11 // pred_fallthru
          _
        // Predicated region
        $region17: #{tpu_custom_call.1} parent=11 // pred_check
          %p181 = pneg %p87
        $region18: #{tpu_custom_call.1} parent=11 // pred_check_branch
          %183 = sbr.rel (%p181) target = $region20
        $region19: #{tpu_custom_call.1} parent=11 // pred_region
          %s185 = ssub.s32 128, 128
          %186 = vsyncadd [#allocation6], %s185
          %s188 = sshll.u32 [#allocation7], 4
          %s189 = int_to_ptr.vmem [resolvable:$true] %s188
          %191 = dma.hbm_to_vmem [thread:$0]  %s2, 128, %s189, [#allocation6]
        $region20: #{tpu_custom_call.1} parent=11 // pred_fallthru
          _
        // Predicated region
        $region21: #{tpu_custom_call.1} parent=11 // pred_check
          %p192 = pneg %p108
        $region22: #{tpu_custom_call.1} parent=11 // pred_check_branch
          %194 = sbr.rel (%p192) target = $region24
        $region23: #{tpu_custom_call.1} parent=11 // pred_region
          %s196 = ssub.s32 128, 128
          %197 = vsyncadd [#allocation9], %s196
          %s199 = sshll.u32 [#allocation8], 4
          %s200 = int_to_ptr.vmem [resolvable:$true] %s199
          %202 = dma.hbm_to_vmem [thread:$0]  %s3, 128, %s200, [#allocation9]
        $region24: #{tpu_custom_call.1} parent=11 // pred_fallthru
          _
        // Predicated region
        $region25: #{tpu_custom_call.1} parent=11 // pred_check
          %p203 = pneg %p129
        $region26: #{tpu_custom_call.1} parent=11 // pred_check_branch
          %205 = sbr.rel (%p203) target = $region28
        $region27: #{tpu_custom_call.1} parent=11 // pred_region
          %s207 = ssub.s32 128, 128
          %208 = vsyncadd [#allocation9], %s207
          %s210 = sshll.u32 [#allocation10], 4
          %s211 = int_to_ptr.vmem [resolvable:$true] %s210
          %213 = dma.hbm_to_vmem [thread:$0]  %s4, 128, %s211, [#allocation9]
        $region28: #{tpu_custom_call.1} parent=11 // pred_fallthru
          _
      $region12: #{tpu_custom_call.1} parent=5 // pred_fallthru
        _
      %p214 = scmp.lt.s32.totalorder %s19, 2
      // Predicated region
      $region29: #{tpu_custom_call.1} parent=5 // pred_check
        %p215 = pneg %p214
      $region30: #{tpu_custom_call.1} parent=5 // pred_check_branch
        %217 = sbr.rel (%p215) target = $region32
      $region31: #{tpu_custom_call.1} parent=5 // pred_region
        // Predicated region
        $region33: #{tpu_custom_call.1} parent=31 // pred_check
          %p218 = pneg %p39
        $region34: #{tpu_custom_call.1} parent=31 // pred_check_branch
          %220 = sbr.rel (%p218) target = $region36
        $region35: #{tpu_custom_call.1} parent=31 // pred_region
          %s221 = sand.u32 %s29, 1
          %s222 = scalar_lea.sflag [#allocation3], %s221
          %s223 = sand.u32 %s29, 1
          %s224 = smul.addr %s223, 8
          %s225 = scalar_lea.vmem [#allocation2], %s224
          %s227 = ssub.s32 128, 128
          %228 = vsyncadd %s222, %s227
          %s229 = smul.addr %s19, 2
          %s230 = smul.addr %s229, 64
          %s231 = scalar_lea.hbm %s0, %s230
          %s233 = sshll.u32 %s225, 4
          %s234 = int_to_ptr.vmem [resolvable:$true] %s233
          %236 = dma.hbm_to_vmem [thread:$0]  %s231, 128, %s234, %s222
        $region36: #{tpu_custom_call.1} parent=31 // pred_fallthru
          _
      $region32: #{tpu_custom_call.1} parent=5 // pred_fallthru
        _
      %p237 = scmp.le.s32.totalorder 1, %s19
      %p238 = scmp.lt.s32.totalorder %s19, 3
      %p239 = pnand %p237, %p238
      %p240 = pneg %p239
      // Predicated region
      $region37: #{tpu_custom_call.1} parent=5 // pred_check
        _
      $region38: #{tpu_custom_call.1} parent=5 // pred_check_branch
        %242 = sbr.rel (%p239) target = $region40
      $region39: #{tpu_custom_call.1} parent=5 // pred_region
        %s243 = ssub.s32 %s19, 1
        %s244 = sand.u32 %s32, 1
        %s245 = scalar_lea.sflag [#allocation3], %s244
        %s246 = sand.u32 %s32, 1
        %s247 = smul.addr %s246, 8
        %s248 = scalar_lea.vmem [#allocation2], %s247
        // Predicated region
        $region41: #{tpu_custom_call.1} parent=39 // pred_check
          %p249 = pneg %p45
        $region42: #{tpu_custom_call.1} parent=39 // pred_check_branch
          %251 = sbr.rel (%p249) target = $region44
        $region43: #{tpu_custom_call.1} parent=39 // pred_region
          %252 = dma.done %s245, 128
        $region44: #{tpu_custom_call.1} parent=39 // pred_fallthru
          _
        // Predicated region
        $region45: #{tpu_custom_call.1} parent=39 // pred_check
          %p253 = pneg %p66
        $region46: #{tpu_custom_call.1} parent=39 // pred_check_branch
          %255 = sbr.rel (%p253) target = $region48
        $region47: #{tpu_custom_call.1} parent=39 // pred_region
          %256 = dma.done [#allocation6], 128
        $region48: #{tpu_custom_call.1} parent=39 // pred_fallthru
          _
        // Predicated region
        $region49: #{tpu_custom_call.1} parent=39 // pred_check
          %p257 = pneg %p87
        $region50: #{tpu_custom_call.1} parent=39 // pred_check_branch
          %259 = sbr.rel (%p257) target = $region52
        $region51: #{tpu_custom_call.1} parent=39 // pred_region
          %260 = dma.done [#allocation6], 128
        $region52: #{tpu_custom_call.1} parent=39 // pred_fallthru
          _
        // Predicated region
        $region53: #{tpu_custom_call.1} parent=39 // pred_check
          %p261 = pneg %p108
        $region54: #{tpu_custom_call.1} parent=39 // pred_check_branch
          %263 = sbr.rel (%p261) target = $region56
        $region55: #{tpu_custom_call.1} parent=39 // pred_region
          %264 = dma.done [#allocation9], 128
        $region56: #{tpu_custom_call.1} parent=39 // pred_fallthru
          _
        // Predicated region
        $region57: #{tpu_custom_call.1} parent=39 // pred_check
          %p265 = pneg %p129
        $region58: #{tpu_custom_call.1} parent=39 // pred_check_branch
          %267 = sbr.rel (%p265) target = $region60
        $region59: #{tpu_custom_call.1} parent=39 // pred_region
          %268 = dma.done [#allocation9], 128
        $region60: #{tpu_custom_call.1} parent=39 // pred_fallthru
          _
        %s269 = sand.u32 %s32, 1
        %s270 = scalar_lea.sflag [#allocation3], %s269
        %s271 = sand.u32 %s32, 1
        %s272 = smul.addr %s271, 8
        %s273 = scalar_lea.vmem [#allocation2], %s272
        %p274 = pneg %p45
        %p275 = pneg %p42
        %p276 = pneg %p66
        %p277 = pneg %p63
        %p278 = pneg %p87
        %p279 = pneg %p84
        %p280 = pneg %p108
        %p281 = pneg %p105
        %p282 = pneg %p129
        %p283 = pneg %p126
        %p284 = pneg %p155
        %p285 = pneg %p152
        %s286 = sand.u32 %s142, 1
        %s287 = scalar_lea.sflag [#allocation4], %s286
        %s288 = sand.u32 %s142, 1
        %s289 = smul.addr %s288, 16
        %s290 = scalar_lea.vmem [#allocation11], %s289
        %v291 = vld [vmem:[#allocation5] sm:$0xff]
        %v292 = vld [vmem:[#allocation7] sm:$0xff]
        %v293 = vld [vmem:[#allocation8] sm:$0xff]
        %v294 = vld [vmem:[#allocation10] sm:$0xff]
        %v295 = vld [vmem:[%s248] sm:$0x77]
        %297 = vset.pattern.permute.xlu0 0
        %298 = vperm.xlu0 %297, %v291
        %v299 = vpop.permute.xlu0 %298
        %v302 = vlaneseq
        %v303 = vshrl.u32 %v302, 7
        %v304 = vsub.s32 0, %v303
        %v305 = vrot.slane %v295, %v304
        %v306 = vlaneseq
        %v307 = vshrl.u32 %v306, 7
        %v308 = vsub.s32 4, %v307
        %v309 = vrot.slane %v295, %v308
        %v312 = vlaneseq
        %v313 = vshrl.u32 %v312, 7
        %v314 = vsub.s32 0, %v313
        %v315 = vrot.slane %v305, %v314
        %v316 = vlaneseq
        %v317 = vshrl.u32 %v316, 7
        %v318 = vsub.s32 0, %v317
        %v319 = vrot.slane %v309, %v318
        %v320 = vmul.f32 %v299, %v315
        %v321 = vmul.f32 %v299, %v319
        %322 = vset.pattern.permute.xlu0 1
        %323 = vperm.xlu0 %322, %v291
        %v324 = vpop.permute.xlu0 %323
        %v326 = vlaneseq
        %v327 = vshrl.u32 %v326, 7
        %v328 = vsub.s32 1, %v327
        %v329 = vrot.slane %v295, %v328
        %v330 = vlaneseq
        %v331 = vshrl.u32 %v330, 7
        %v332 = vsub.s32 5, %v331
        %v333 = vrot.slane %v295, %v332
        %v336 = vlaneseq
        %v337 = vshrl.u32 %v336, 7
        %v338 = vsub.s32 1, %v337
        %v339 = vrot.slane %v329, %v338
        %v340 = vlaneseq
        %v341 = vshrl.u32 %v340, 7
        %v342 = vsub.s32 1, %v341
        %v343 = vrot.slane %v333, %v342
        %v344 = vmul.f32 %v324, %v339
        %v345 = vmul.f32 %v324, %v343
        %v346 = vadd.f32 %v320, %v344
        %v347 = vadd.f32 %v321, %v345
        %348 = vset.pattern.permute.xlu0 2
        %349 = vperm.xlu0 %348, %v291
        %v350 = vpop.permute.xlu0 %349
        %v352 = vlaneseq
        %v353 = vshrl.u32 %v352, 7
        %v354 = vsub.s32 2, %v353
        %v355 = vrot.slane %v295, %v354
        %v356 = vlaneseq
        %v357 = vshrl.u32 %v356, 7
        %v358 = vsub.s32 6, %v357
        %v359 = vrot.slane %v295, %v358
        %v362 = vlaneseq
        %v363 = vshrl.u32 %v362, 7
        %v364 = vsub.s32 2, %v363
        %v365 = vrot.slane %v355, %v364
        %v366 = vlaneseq
        %v367 = vshrl.u32 %v366, 7
        %v368 = vsub.s32 2, %v367
        %v369 = vrot.slane %v359, %v368
        %v370 = vmul.f32 %v350, %v365
        %v371 = vmul.f32 %v350, %v369
        %v372 = vadd.f32 %v346, %v370
        %v373 = vadd.f32 %v347, %v371
        %375 = vset.pattern.permute.xlu0 0
        %376 = vperm.xlu0 %375, %v292
        %v377 = vpop.permute.xlu0 %376
        %v379 = vadd.f32 %v372, %v377
        %v380 = vadd.f32 %v373, %v377
        %v381 = vadd.f32 %v379, %v380
        %382 = vadd.xlane.f32.xlu0 %v381
        %v383 = vpop.xlane.xlu0 %382
        %v384 = vmul.f32 %v383, 0.00390625
        %v385 = vsub.f32 %v379, %v384
        %v386 = vsub.f32 %v380, %v384
        %v387 = vmul.f32 %v385, %v385
        %v388 = vmul.f32 %v386, %v386
        %v389 = vadd.f32 %v387, %v388
        %390 = vadd.xlane.f32.xlu0 %v389
        %v391 = vpop.xlane.xlu0 %390
        %v392 = vmul.f32 %v391, 0.00390625
        %v393 = vadd.f32 %v392, 1e-05
        %v394 = vrsqrt.pop %v393
        %v396 = vlaneseq
        %v397 = vand.u32 %v396, 127
        %v398 = vlaneseq
        %v399 = vshrl.u32 %v398, 7
        %v400 = vsub.s32 %v397, %v399
        %v401 = vrot.slane %v394, %v400
        %vm402 = vcmask 1042434
        %v403 = vsel %vm402, %v401, %v401
        %vm404 = vcmask 1043459
        %v405 = vsel %vm404, %v401, %v403
        %vm406 = vcmask 1044484
        %v407 = vsel %vm406, %v401, %v405
        %vm408 = vcmask 1045509
        %v409 = vsel %vm408, %v401, %v407
        %vm410 = vcmask 1046534
        %v411 = vsel %vm410, %v401, %v409
        %vm412 = vcmask 1047559
        %v413 = vsel %vm412, %v401, %v411
        %v415 = vmul.f32 %v293, %v413
        %vm416 = vcmask 64512
        %v418 = vsel %vm416, %v415, 0
        %420 = vmatprep.subr.mxu0 0.0
        %421 = vmatpush1.msra.mxu0 %v291
        %422 = vmatprep.subr.mxu0 0.0
        %423 = vmatpush1.msra.mxu0 0.0
        %424 = vmatprep.subr.mxu0 0.0
        %425 = vmatpush1.msra.mxu0 0.0
        %426 = vmatprep.subr.mxu0 0.0
        %427 = vmatpush1.msra.mxu0 0.0
        %428 = vmatprep.subr.mxu0 0.0
        %429 = vmatpush1.msra.mxu0 0.0
        %430 = vmatprep.subr.mxu0 0.0
        %431 = vmatpush1.msra.mxu0 0.0
        %432 = vmatprep.subr.mxu0 0.0
        %433 = vmatpush1.msra.mxu0 0.0
        %434 = vmatprep.subr.mxu0 0.0
        %435 = vmatpush1.msra.mxu0 0.0
        %436 = vmatprep.subr.mxu0 0.0
        %437 = vmatpush1.msra.mxu0 0.0
        %438 = vmatprep.subr.mxu0 0.0
        %439 = vmatpush1.msra.mxu0 0.0
        %440 = vmatprep.subr.mxu0 0.0
        %441 = vmatpush1.msra.mxu0 0.0
        %442 = vmatprep.subr.mxu0 0.0
        %443 = vmatpush1.msra.mxu0 0.0
        %444 = vmatprep.subr.mxu0 0.0
        %445 = vmatpush1.msra.mxu0 0.0
        %446 = vmatprep.subr.mxu0 0.0
        %447 = vmatpush1.msra.mxu0 0.0
        %448 = vmatprep.subr.mxu0 0.0
        %449 = vmatpush1.msra.mxu0 0.0
        %450 = vmatprep.subr.mxu0 0.0
        %451 = vmatpush1.msra.mxu0 0.0
        %452 = vmatprep.subr.mxu0 0.0
        %453 = vmatpush1.msra.mxu0 0.0
        %454 = vmatprep.subr.mxu0 0.0
        %455 = vmatpush1.msra.mxu0 0.0
        %456 = vmatprep.subr.mxu0 0.0
        %457 = vmatpush1.msra.mxu0 0.0
        %458 = vmatprep.subr.mxu0 0.0
        %459 = vmatpush1.msra.mxu0 0.0
        %460 = vmatprep.subr.mxu0 0.0
        %461 = vmatpush1.msra.mxu0 0.0
        %462 = vmatprep.subr.mxu0 0.0
        %463 = vmatpush1.msra.mxu0 0.0
        %464 = vmatprep.subr.mxu0 0.0
        %465 = vmatpush1.msra.mxu0 0.0
        %466 = vmatprep.subr.mxu0 0.0
        %467 = vmatpush1.msra.mxu0 0.0
        %468 = vmatprep.subr.mxu0 0.0
        %469 = vmatpush1.msra.mxu0 0.0
        %470 = vmatprep.subr.mxu0 0.0
        %471 = vmatpush1.msra.mxu0 0.0
        %472 = vmatprep.subr.mxu0 0.0
        %473 = vmatpush1.msra.mxu0 0.0
        %474 = vmatprep.subr.mxu0 0.0
        %475 = vmatpush1.msra.mxu0 0.0
        %476 = vmatprep.subr.mxu0 0.0
        %477 = vmatpush1.msra.mxu0 0.0
        %478 = vmatprep.subr.mxu0 0.0
        %479 = vmatpush1.msra.mxu0 0.0
        %480 = vmatprep.subr.mxu0 0.0
        %481 = vmatpush1.msra.mxu0 0.0
        %482 = vmatprep.subr.mxu0 0.0
        %483 = vmatpush1.msra.mxu0 0.0
        %484 = vmatprep.mubr.f32.mxu0 0.0
        %485 = vmatmul.mubr.f32.gmra.mrb[0].mxu0 %v418
        %v486 = vpop.f32.mrb[0].mxu0
        %v487 = vadd.f32 0.0, %v486
        %v488 = vpop.f32.mrb[0].mxu0
        %489 = vdwg.mxu0
        %v490 = vsub.f32 %v292, %v384
        %491 = vmatprep.subr.mxu0 0.0
        %492 = vmatpush1.msra.mxu0 %v490
        %493 = vmatprep.subr.mxu0 0.0
        %494 = vmatpush1.msra.mxu0 0.0
        %495 = vmatprep.subr.mxu0 0.0
        %496 = vmatpush1.msra.mxu0 0.0
        %497 = vmatprep.subr.mxu0 0.0
        %498 = vmatpush1.msra.mxu0 0.0
        %499 = vmatprep.subr.mxu0 0.0
        %500 = vmatpush1.msra.mxu0 0.0
        %501 = vmatprep.subr.mxu0 0.0
        %502 = vmatpush1.msra.mxu0 0.0
        %503 = vmatprep.subr.mxu0 0.0
        %504 = vmatpush1.msra.mxu0 0.0
        %505 = vmatprep.subr.mxu0 0.0
        %506 = vmatpush1.msra.mxu0 0.0
        %507 = vmatprep.subr.mxu0 0.0
        %508 = vmatpush1.msra.mxu0 0.0
        %509 = vmatprep.subr.mxu0 0.0
        %510 = vmatpush1.msra.mxu0 0.0
        %511 = vmatprep.subr.mxu0 0.0
        %512 = vmatpush1.msra.mxu0 0.0
        %513 = vmatprep.subr.mxu0 0.0
        %514 = vmatpush1.msra.mxu0 0.0
        %515 = vmatprep.subr.mxu0 0.0
        %516 = vmatpush1.msra.mxu0 0.0
        %517 = vmatprep.subr.mxu0 0.0
        %518 = vmatpush1.msra.mxu0 0.0
        %519 = vmatprep.subr.mxu0 0.0
        %520 = vmatpush1.msra.mxu0 0.0
        %521 = vmatprep.subr.mxu0 0.0
        %522 = vmatpush1.msra.mxu0 0.0
        %523 = vmatprep.subr.mxu0 0.0
        %524 = vmatpush1.msra.mxu0 0.0
        %525 = vmatprep.subr.mxu0 0.0
        %526 = vmatpush1.msra.mxu0 0.0
        %527 = vmatprep.subr.mxu0 0.0
        %528 = vmatpush1.msra.mxu0 0.0
        %529 = vmatprep.subr.mxu0 0.0
        %530 = vmatpush1.msra.mxu0 0.0
        %531 = vmatprep.subr.mxu0 0.0
        %532 = vmatpush1.msra.mxu0 0.0
        %533 = vmatprep.subr.mxu0 0.0
        %534 = vmatpush1.msra.mxu0 0.0
        %535 = vmatprep.subr.mxu0 0.0
        %536 = vmatpush1.msra.mxu0 0.0
        %537 = vmatprep.subr.mxu0 0.0
        %538 = vmatpush1.msra.mxu0 0.0
        %539 = vmatprep.subr.mxu0 0.0
        %540 = vmatpush1.msra.mxu0 0.0
        %541 = vmatprep.subr.mxu0 0.0
        %542 = vmatpush1.msra.mxu0 0.0
        %543 = vmatprep.subr.mxu0 0.0
        %544 = vmatpush1.msra.mxu0 0.0
        %545 = vmatprep.subr.mxu0 0.0
        %546 = vmatpush1.msra.mxu0 0.0
        %547 = vmatprep.subr.mxu0 0.0
        %548 = vmatpush1.msra.mxu0 0.0
        %549 = vmatprep.subr.mxu0 0.0
        %550 = vmatpush1.msra.mxu0 0.0
        %551 = vmatprep.subr.mxu0 0.0
        %552 = vmatpush1.msra.mxu0 0.0
        %553 = vmatprep.subr.mxu0 0.0
        %554 = vmatpush1.msra.mxu0 0.0
        %555 = vmatprep.mubr.f32.mxu0 0.0
        %556 = vmatmul.mubr.f32.gmra.mrb[0].mxu0 %v418
        %v557 = vpop.f32.mrb[0].mxu0
        %v558 = vadd.f32 %v294, %v557
        %v559 = vpop.f32.mrb[0].mxu0
        %560 = vdwg.mxu0
        %562 = vset.pattern.permute.xlu0 0
        %563 = vperm.xlu0 %562, %v487
        %v564 = vpop.permute.xlu0 %563
        %v566 = vmul.f32 %v564, %v315
        %v567 = vmul.f32 %v564, %v319
        %568 = vset.pattern.permute.xlu0 1
        %569 = vperm.xlu0 %568, %v487
        %v570 = vpop.permute.xlu0 %569
        %v572 = vmul.f32 %v570, %v339
        %v573 = vmul.f32 %v570, %v343
        %v574 = vadd.f32 %v566, %v572
        %v575 = vadd.f32 %v567, %v573
        %576 = vset.pattern.permute.xlu0 2
        %577 = vperm.xlu0 %576, %v487
        %v578 = vpop.permute.xlu0 %577
        %v580 = vmul.f32 %v578, %v365
        %v581 = vmul.f32 %v578, %v369
        %v582 = vadd.f32 %v574, %v580
        %v583 = vadd.f32 %v575, %v581
        %585 = vset.pattern.permute.xlu0 0
        %586 = vperm.xlu0 %585, %v558
        %v587 = vpop.permute.xlu0 %586
        %v589 = vadd.f32 %v582, %v587
        %v590 = vadd.f32 %v583, %v587
        %v591 = vmax.f32 %v589, 0.0
        %v592 = vmax.f32 %v590, 0.0
        %593 = vst [vmem:[%s290] sm:$0xff] %v591
        %594 = vst [vmem:[%s290 + $0x8] sm:$0xff] %v592
        %s595 = sand.u32 %s142, 1
        %s596 = scalar_lea.sflag [#allocation4], %s595
        %s597 = sand.u32 %s142, 1
        %s598 = smul.addr %s597, 16
        %s599 = scalar_lea.vmem [#allocation11], %s598
        // Predicated region
        $region61: #{tpu_custom_call.1} parent=39 // pred_check
          %p600 = pneg %p152
        $region62: #{tpu_custom_call.1} parent=39 // pred_check_branch
          %602 = sbr.rel (%p600) target = $region64
        $region63: #{tpu_custom_call.1} parent=39 // pred_region
          %s604 = ssub.s32 256, 256
          %605 = vsyncadd %s596, %s604
          %s606 = smul.addr %s24, 2
          %s607 = smul.addr %s606, 128
          %s608 = scalar_lea.hbm %s5, %s607
          %s610 = sshll.u32 %s599, 4
          %s611 = int_to_ptr.vmem [resolvable:$true] %s610
          %613 = dma.vmem_to_hbm [thread:$0]  %s611, 256, %s608, %s596
        $region64: #{tpu_custom_call.1} parent=39 // pred_fallthru
          _
      $region40: #{tpu_custom_call.1} parent=5 // pred_fallthru
        _
      %p614 = scmp.le.s32.totalorder 2, %s19
      // Predicated region
      $region65: #{tpu_custom_call.1} parent=5 // pred_check
        %p615 = pneg %p614
      $region66: #{tpu_custom_call.1} parent=5 // pred_check_branch
        %617 = sbr.rel (%p615) target = $region68
      $region67: #{tpu_custom_call.1} parent=5 // pred_region
        %s618 = ssub.s32 %s19, 2
        // Predicated region
        $region69: #{tpu_custom_call.1} parent=67 // pred_check
          %p619 = pneg %p158
        $region70: #{tpu_custom_call.1} parent=67 // pred_check_branch
          %621 = sbr.rel (%p619) target = $region72
        $region71: #{tpu_custom_call.1} parent=67 // pred_region
          %s622 = sand.u32 %s143, 1
          %s623 = scalar_lea.sflag [#allocation4], %s622
          %s624 = sand.u32 %s143, 1
          %s625 = smul.addr %s624, 16
          %s626 = scalar_lea.vmem [#allocation11], %s625
          %627 = dma.done %s623, 256
        $region72: #{tpu_custom_call.1} parent=67 // pred_fallthru
          _
      $region68: #{tpu_custom_call.1} parent=5 // pred_fallthru
        _
    $region6: #{tpu_custom_call.1} parent=1 // loop_footer
      %s23 = sadd.s32 1, %s19
    $region7: #{tpu_custom_call.1} parent=1 // loop_footer_branch
      %18 = sbr.rel target = $region3
    $region8: #{tpu_custom_call.1} parent=1 // loop_exit
      _
    %628 = vsyncpa [#allocation3], 1
    %s629 = scalar_lea.sflag [#allocation3], 1
    %630 = vsyncpa %s629, 1
    %631 = vsyncpa [#allocation6], 1
    %632 = vsyncpa [#allocation9], 1
    %633 = vsyncpa [#allocation4], 1
    %s634 = scalar_lea.sflag [#allocation4], 1
    %635 = vsyncpa %s634, 1

</llo_original>
